<compile_context>
chip_gen: v5e
topology: v5e:2x2
jax: 0.10.0
libtpu: 0.0.40
codegen_flags: <defaults>
</compile_context>

<pallas_src>
import functools
import numpy as np
import jax
import jax.numpy as jnp
from jax.experimental import pallas as pl
from jax.experimental.pallas import tpu as pltpu

TM_MAX = 512                      # max pixel rows per grid step (flat kernels)
_VMEM_LIMIT = 48 * 1024 * 1024    # fits v5e/v6e/v7x scoped VMEM budgets


def _round_up(v, m):
    return ((v + m - 1) // m) * m


def _choose_tm(m, tm_max=TM_MAX):
    return min(tm_max, _round_up(m, 8))


def _approx_recip(x):
    # pl.reciprocal(approx=True) lowers to the EUP vrcp slot (nearly free).
    if hasattr(pl, "reciprocal"):
        return pl.reciprocal(x, approx=True)
    return 1.0 / x


# ---------------------------------------------------------------------------
# Pallas kernels
# ---------------------------------------------------------------------------
def _matmul_bn_act_kernel(x_ref, w_ref, sb_ref, o_ref, *, apply_silu):
    # x_ref: (TM, K) bf16, w_ref: (K, N) bf16, sb_ref: (2, N) f32 (scale, bias)
    y = jnp.dot(x_ref[...], w_ref[...], preferred_element_type=jnp.float32)
    y = y * sb_ref[0:1, :] + sb_ref[1:2, :]
    if apply_silu:
        y = y * jax.nn.sigmoid(y)          # SiLU
    o_ref[...] = y.astype(o_ref.dtype)


def _spatial_conv_kernel(*refs, taps, ho, wo, cin, apply_silu, has_head):
    # Whole-image 3x3 conv: the 9-tap "im2col" happens in VMEM via static
    # slices of the padded (or space-to-depth'd) image block.
    if has_head:
        x_ref, w_ref, sb_ref, hw_ref, hb_ref, o_ref = refs
    else:
        x_ref, w_ref, sb_ref, o_ref = refs
    xb = x_ref[0]                          # (Hin, Win, Cx) for one batch elem
    cout = w_ref.shape[-1]
    acc = jnp.zeros((ho * wo, cout), jnp.float32)
    for t, (ry, cx, ch) in enumerate(taps):            # static 9-tap unroll
        patch = xb[ry:ry + ho, cx:cx + wo, ch:ch + cin]
        acc = acc + jnp.dot(patch.reshape(ho * wo, cin), w_ref[t],
                            preferred_element_type=jnp.float32)
    y = acc * sb_ref[0:1, :] + sb_ref[1:2, :]
    if apply_silu:
        y = y * jax.nn.sigmoid(y)
    if has_head:
        # Fused 1x1 detect-head conv (bias, no activation).
        y = jnp.dot(y.astype(hw_ref.dtype), hw_ref[...],
                    preferred_element_type=jnp.float32) + hb_ref[...]
    o_ref[0] = y.reshape(ho, wo, y.shape[-1]).astype(o_ref.dtype)


def _fuse_levels_kernel(l0_ref, l1_ref, l2_ref, w1_ref, sb1_ref, w2_ref, sb2_ref,
                        wl_ref, sbl_ref, o_ref):
    # Fused: three weight_level 1x1 convs (+BN+SiLU) -> weight_levels 48->3
    # conv (+BN+SiLU, split into three 16->3 blocks, no 48-wide concat) ->
    # softmax over the 3 levels (elementwise, VPU only) -> weighted sum.
    l0 = l0_ref[...]
    l1 = l1_ref[...]
    l2 = l2_ref[...]

    def level_vec(lv, w_ref, sb_ref):
        v = jnp.dot(lv, w_ref[...], preferred_element_type=jnp.float32)
        v = v * sb_ref[0:1, :] + sb_ref[1:2, :]
        return (v * jax.nn.sigmoid(v)).astype(jnp.bfloat16)

    # NOTE: the PyTorch forward applies weight_level_1 to BOTH the level-0 and
    # level-1 maps (weight_level_0 is unused); reproduced exactly.
    v0 = level_vec(l0, w1_ref, sb1_ref)
    v1 = level_vec(l1, w1_ref, sb1_ref)
    v2 = level_vec(l2, w2_ref, sb2_ref)

    wl = wl_ref[...]                       # (48, 3)
    cc = wl.shape[0] // 3
    logits = (jnp.dot(v0, wl[0:cc], preferred_element_type=jnp.float32)
              + jnp.dot(v1, wl[cc:2 * cc], preferred_element_type=jnp.float32)
              + jnp.dot(v2, wl[2 * cc:3 * cc], preferred_element_type=jnp.float32))
    logits = logits * sbl_ref[0:1, :] + sbl_ref[1:2, :]
    logits = logits * jax.nn.sigmoid(logits)            # SiLU (Conv block)

    # Softmax over the 3 level columns, elementwise (no XLU cross-lane reduce).
    a = logits[:, 0:1]
    b = logits[:, 1:2]
    c = logits[:, 2:3]
    m = jnp.maximum(jnp.maximum(a, b), c)
    ea = jnp.exp(a - m)
    eb = jnp.exp(b - m)
    ec = jnp.exp(c - m)
    inv = _approx_recip(ea + eb + ec)
    out = (l0.astype(jnp.float32) * (ea * inv)
           + l1.astype(jnp.float32) * (eb * inv)
           + l2.astype(jnp.float32) * (ec * inv))
    o_ref[...] = out.astype(o_ref.dtype)


def _compiler_params():
    return pltpu.CompilerParams(dimension_semantics=("parallel",),
                                vmem_limit_bytes=_VMEM_LIMIT)


# ---------------------------------------------------------------------------
# Pallas wrappers (with matching pure-JAX reference paths)
# ---------------------------------------------------------------------------
def _matmul_bn_act(x2d, w, sb, *, apply_silu=True, out_dtype=jnp.bfloat16):
    m, kdim = x2d.shape
    n = w.shape[1]
    tm = _choose_tm(m)
    mp = _round_up(m, tm)
    xp = jnp.pad(x2d, ((0, mp - m), (0, 0))) if mp != m else x2d
    kernel = functools.partial(_matmul_bn_act_kernel, apply_silu=apply_silu)
    out = pl.pallas_call(
        kernel,
        out_shape=jax.ShapeDtypeStruct((mp, n), out_dtype),
        grid=(mp // tm,),
        in_specs=[pl.BlockSpec((tm, kdim), lambda i: (i, 0)),
                  pl.BlockSpec((kdim, n), lambda i: (0, 0)),
                  pl.BlockSpec((2, n), lambda i: (0, 0))],
        out_specs=pl.BlockSpec((tm, n), lambda i: (i, 0)),
        compiler_params=_compiler_params(),
    )(xp, w, sb)
    return out[:m]


def conv1x1(x, p, *, apply_silu=True, use_pallas=True):
    """1x1 Conv + folded BN + SiLU on NHWC bf16 input."""
    B, H, W, C = x.shape
    x2 = x.reshape(B * H * W, C)
    if use_pallas:
        out = _matmul_bn_act(x2, p["w"], p["sb"], apply_silu=apply_silu)
    else:
        y = jnp.dot(x2, p["w"], preferred_element_type=jnp.float32)
        y = y * p["sb"][0:1] + p["sb"][1:2]
        if apply_silu:
            y = y * jax.nn.sigmoid(y)
        out = y.astype(jnp.bfloat16)
    return out.reshape(B, H, W, -1)


def _prepare_3x3(x, stride):
    """Pad (and, for stride 2, space-to-depth) so all in-kernel tap slices are
    static and contiguous.  Returns (xin, taps, Ho, Wo, cin_per_tap)."""
    B, H, W, C = x.shape
    xp = jnp.pad(x, ((0, 0), (1, 1), (1, 1), (0, 0)))
    if stride == 1:
        taps = [(ky, kx, 0) for ky in range(3) for kx in range(3)]
        return xp, taps, H, W, C
    assert stride == 2 and H % 2 == 0 and W % 2 == 0
    Hp, Wp = H + 2, W + 2
    xs = xp.reshape(B, Hp // 2, 2, Wp // 2, 2, C)
    xs = xs.transpose(0, 1, 3, 2, 4, 5).reshape(B, Hp // 2, Wp // 2, 4 * C)
    # xs[b, Y, X, (dy*2+dx)*C + c] == xp[b, 2Y+dy, 2X+dx, c]
    taps = [(ky // 2, kx // 2, (2 * (ky % 2) + (kx % 2)) * C)
            for ky in range(3) for kx in range(3)]
    return xs, taps, H // 2, W // 2, C


def _spatial_conv(x, p, *, stride, head=None, apply_silu=True, use_pallas=True):
    """3x3 Conv + folded BN + SiLU (optionally fused with a 1x1 head conv)."""
    B = x.shape[0]
    xin, taps, ho, wo, cin = _prepare_3x3(x, stride)
    w9, sb = p["w"], p["sb"]
    cout = w9.shape[-1]
    if head is not None:
        hw, hb = head["w"], head["b"]
        n_out, out_dtype = hw.shape[-1], jnp.float32
    else:
        n_out, out_dtype = cout, jnp.bfloat16

    if not use_pallas:
        acc = jnp.zeros((B * ho * wo, cout), jnp.float32)
        for t, (ry, cx, ch) in enumerate(taps):
            patch = xin[:, ry:ry + ho, cx:cx + wo, ch:ch + cin]
            acc = acc + jnp.dot(patch.reshape(B * ho * wo, cin), w9[t],
                                preferred_element_type=jnp.float32)
        y = acc * sb[0:1] + sb[1:2]
        if apply_silu:
            y = y * jax.nn.sigmoid(y)
        if head is not None:
            y = jnp.dot(y.astype(hw.dtype), hw,
                        preferred_element_type=jnp.float32) + hb
        return y.reshape(B, ho, wo, n_out).astype(out_dtype)

    kernel = functools.partial(_spatial_conv_kernel, taps=taps, ho=ho, wo=wo,
                               cin=cin, apply_silu=apply_silu,
                               has_head=head is not None)
    in_arrays = [xin, w9, sb]
    in_specs = [pl.BlockSpec((1,) + xin.shape[1:], lambda b: (b, 0, 0, 0)),
                pl.BlockSpec(w9.shape, lambda b: (0, 0, 0)),
                pl.BlockSpec(sb.shape, lambda b: (0, 0))]
    if head is not None:
        in_arrays += [hw, hb]
        in_specs += [pl.BlockSpec(hw.shape, lambda b: (0, 0)),
                     pl.BlockSpec(hb.shape, lambda b: (0, 0))]
    # TODO(synk): for very large feature maps, row-tile this kernel with a
    # halo DMA instead of whole-image VMEM blocks.
    return pl.pallas_call(
        kernel,
        out_shape=jax.ShapeDtypeStruct((B, ho, wo, n_out), out_dtype),
        grid=(B,),
        in_specs=in_specs,
        out_specs=pl.BlockSpec((1, ho, wo, n_out), lambda b: (b, 0, 0, 0)),
        compiler_params=_compiler_params(),
    )(*in_arrays)


def _fuse_levels_ref(a0, a1, a2, p_w1, p_w2, p_wls):
    def vec(a, p):
        v = jnp.dot(a, p["w"], preferred_element_type=jnp.float32)
        v = v * p["sb"][0:1] + p["sb"][1:2]
        return (v * jax.nn.sigmoid(v)).astype(jnp.bfloat16)

    v0, v1, v2 = vec(a0, p_w1), vec(a1, p_w1), vec(a2, p_w2)
    wl = p_wls["w"]
    cc = wl.shape[0] // 3
    logits = (jnp.dot(v0, wl[0:cc], preferred_element_type=jnp.float32)
              + jnp.dot(v1, wl[cc:2 * cc], preferred_element_type=jnp.float32)
              + jnp.dot(v2, wl[2 * cc:3 * cc], preferred_element_type=jnp.float32))
    logits = logits * p_wls["sb"][0:1] + p_wls["sb"][1:2]
    logits = logits * jax.nn.sigmoid(logits)
    prob = jax.nn.softmax(logits, axis=-1)
    out = (a0.astype(jnp.float32) * prob[:, 0:1]
           + a1.astype(jnp.float32) * prob[:, 1:2]
           + a2.astype(jnp.float32) * prob[:, 2:3])
    return out.astype(jnp.bfloat16)


def fuse_levels(l0, l1, l2, p_w1, p_w2, p_wls, *, use_pallas=True):
    """Fused weight_level convs + weight_levels conv + softmax + weighted sum."""
    B, H, W, C = l0.shape
    M = B * H * W
    a0, a1, a2 = (t.reshape(M, C) for t in (l0, l1, l2))
    if not use_pallas:
        return _fuse_levels_ref(a0, a1, a2, p_w1, p_w2, p_wls).reshape(B, H, W, C)
    tm = _choose_tm(M)
    mp = _round_up(M, tm)
    if mp != M:
        pad = ((0, mp - M), (0, 0))
        # Padded rows compute finite garbage (softmax of constant logits) and
        # are sliced off below; the padded output is never consumed.
        a0, a1, a2 = (jnp.pad(t, pad) for t in (a0, a1, a2))
    out = pl.pallas_call(
        _fuse_levels_kernel,
        out_shape=jax.ShapeDtypeStruct((mp, C), jnp.bfloat16),
        grid=(mp // tm,),
        in_specs=[pl.BlockSpec((tm, C), lambda i: (i, 0)),
                  pl.BlockSpec((tm, C), lambda i: (i, 0)),
                  pl.BlockSpec((tm, C), lambda i: (i, 0)),
                  pl.BlockSpec(p_w1["w"].shape, lambda i: (0, 0)),
                  pl.BlockSpec(p_w1["sb"].shape, lambda i: (0, 0)),
                  pl.BlockSpec(p_w2["w"].shape, lambda i: (0, 0)),
                  pl.BlockSpec(p_w2["sb"].shape, lambda i: (0, 0)),
                  pl.BlockSpec(p_wls["w"].shape, lambda i: (0, 0)),
                  pl.BlockSpec(p_wls["sb"].shape, lambda i: (0, 0))],
        out_specs=pl.BlockSpec((tm, C), lambda i: (i, 0)),
        compiler_params=_compiler_params(),
    )(a0, a1, a2, p_w1["w"], p_w1["sb"], p_w2["w"], p_w2["sb"],
      p_wls["w"], p_wls["sb"])
    return out[:M].reshape(B, H, W, C)


def upsample2_nearest(x):
    # F.interpolate(scale_factor=2, mode='nearest') in NHWC.
    return jnp.repeat(jnp.repeat(x, 2, axis=1), 2, axis=2)


# ---------------------------------------------------------------------------
# Parameter initialization (deterministic, synthetic; BN folded, bf16 weights)
# ---------------------------------------------------------------------------
def init_conv_block(key, cin, cout, k):
    k1, k2, k3, k4, k5 = jax.random.split(key, 5)
    w = jax.random.normal(k1, (k, k, cin, cout), jnp.float32) / np.sqrt(k * k * cin)
    gamma = 1.0 + 0.1 * jax.random.normal(k2, (cout,), jnp.float32)
    beta = 0.1 * jax.random.normal(k3, (cout,), jnp.float32)
    rmean = 0.1 * jax.random.normal(k4, (cout,), jnp.float32)
    rvar = jax.random.uniform(k5, (cout,), jnp.float32, minval=0.5, maxval=1.5)
    scale = gamma / jnp.sqrt(rvar + 1e-5)          # folded BatchNorm (eval stats)
    bias = beta - rmean * scale
    if k == 1:
        w_out = w.reshape(cin, cout)
    else:
        w_out = w.reshape(k * k, cin, cout)        # tap order ky*3 + kx
    return {"w": w_out.astype(jnp.bfloat16),
            "sb": jnp.stack([scale, bias]).astype(jnp.float32)}


def init_head(key, cin, cout):
    k1, k2 = jax.random.split(key)
    w = jax.random.normal(k1, (cin, cout), jnp.float32) / np.sqrt(cin)
    b = 0.1 * jax.random.normal(k2, (cout,), jnp.float32)
    return {"w": w.astype(jnp.bfloat16), "b": b.reshape(1, cout)}


def init_isffm(key, level, multiplier=0.5, compress_c=16):
    dim = [int(512 * multiplier), int(512 * multiplier), int(256 * multiplier)]
    inter = dim[level]
    ks = jax.random.split(key, 8)
    p = {}
    if level in (0, 1):
        p["compress_level_0"] = init_conv_block(ks[0], int(512 * multiplier), inter, 1)  # unused in forward
        p["stride_level_2"] = init_conv_block(ks[1], int(256 * multiplier), inter, 3)
        p["expand"] = init_conv_block(ks[2], inter, int(512 * multiplier), 3)
    else:
        p["compress_level_0"] = init_conv_block(ks[0], int(512 * multiplier), inter, 1)
        p["compress_level_1"] = init_conv_block(ks[1], int(512 * multiplier), inter, 1)
        p["expand"] = init_conv_block(ks[2], inter, int(256 * multiplier), 3)
    p["weight_level_0"] = init_conv_block(ks[3], inter, compress_c, 1)  # unused (as in PyTorch forward)
    p["weight_level_1"] = init_conv_block(ks[4], inter, compress_c, 1)
    p["weight_level_2"] = init_conv_block(ks[5], inter, compress_c, 1)
    p["weight_levels"] = init_conv_block(ks[6], compress_c * 3, 3, 1)
    return p


# ---------------------------------------------------------------------------
# Forward passes
# ---------------------------------------------------------------------------
def isffm_forward(x, params, level, head_params, use_pallas=True):
    # x: [x0 (high-res 128ch), x1 (256ch), x2 (256ch)], NHWC bf16
    x_level_0, x_level_1, x_level_2 = x[2], x[1], x[0]
    if level in (0, 1):
        l0r = x_level_0
        l1r = x_level_1
        l2r = _spatial_conv(x_level_2, params["stride_level_2"], stride=2,
                            use_pallas=use_pallas)
    else:
        c0 = conv1x1(x_level_0, params["compress_level_0"], use_pallas=use_pallas)
        # TODO(synk): fold the nearest-2x upsample into the fuse kernel's
        # index_map (read the half-res map with halved block indices) instead
        # of materializing the repeated map in HBM.
        l0r = upsample2_nearest(c0)
        c1 = conv1x1(x_level_1, params["compress_level_1"], use_pallas=use_pallas)
        l1r = upsample2_nearest(c1)
        l2r = x_level_2
    fused = fuse_levels(l0r, l1r, l2r, params["weight_level_1"],
                        params["weight_level_2"], params["weight_levels"],
                        use_pallas=use_pallas)
    # expand 3x3 Conv (+BN+SiLU) fused with the 1x1 detect-head conv.
    return _spatial_conv(fused, params["expand"], stride=1, head=head_params,
                         use_pallas=use_pallas)


def isffm_detect_forward(x_nchw, params, nc=3, na=3, use_pallas=True):
    no = nc + 5
    # NCHW (PyTorch) -> NHWC bf16 (kernel layout); single cast at the boundary.
    x = [jnp.transpose(xi, (0, 2, 3, 1)).astype(jnp.bfloat16) for xi in x_nchw]
    heads = params["m"]
    result = [
        isffm_forward(x, params["l2_fusion"], 2, heads[0], use_pallas=use_pallas),
        isffm_forward(x, params["l1_fusion"], 1, heads[1], use_pallas=use_pallas),
        isffm_forward(x, params["l0_fusion"], 0, heads[2], use_pallas=use_pallas),
    ]
    outs = []
    for h in result:
        bs, ny, nx, _ = h.shape
        # PyTorch: view(bs, na, no, ny, nx).permute(0,1,3,4,2)  ==  split NHWC
        # channels as (na, no) and move na to the front.
        h = h.reshape(bs, ny, nx, na, no).transpose(0, 3, 1, 2, 4)
        outs.append(h)
    # Training-mode output (module default state: training=True, stride=None).
    # TODO(synk): eval-mode decode (sigmoid + grid / anchor_grid scaling) is
    # unreachable with the default module state (self.stride is None); omitted.
    return outs


# ---------------------------------------------------------------------------
if __name__ == "__main__":
    key = jax.random.PRNGKey(0)
    nc, na = 3, 3
    no = nc + 5
    multiplier = 0.5
    ch = (int(256 * multiplier), int(512 * multiplier), int(512 * multiplier))  # (128, 256, 256)

    k_in, k_p = jax.random.split(key)
    k0, k1, k2, kh = jax.random.split(k_p, 4)
    params = {
        "l0_fusion": init_isffm(k0, level=0),
        "l1_fusion": init_isffm(k1, level=1),
        "l2_fusion": init_isffm(k2, level=2),
        "m": [init_head(kk, c, no * na)
              for kk, c in zip(jax.random.split(kh, 3), ch)],
    }

    # Inputs (NCHW): x[0] high-res 128ch, x[1]/x[2] half-res 256ch.
    B, H = 2, 8
    kx0, kx1, kx2 = jax.random.split(k_in, 3)
    x0 = jax.random.normal(kx0, (B, 128, 2 * H, 2 * H), jnp.float32)
    x1 = jax.random.normal(kx1, (B, 256, H, H), jnp.float32)
    x2 = jax.random.normal(kx2, (B, 256, H, H), jnp.float32)
    x = [x0, x1, x2]

    out = isffm_detect_forward(x, params, nc=nc, na=na, use_pallas=True)
    out = jax.block_until_ready(out)

    ref = isffm_detect_forward(x, params, nc=nc, na=na, use_pallas=False)
    ref = jax.block_until_ready(ref)

    expected_shapes = [(B, na, 2 * H, 2 * H, no), (B, na, H, H, no), (B, na, H, H, no)]
    assert [tuple(o.shape) for o in out] == expected_shapes, \
        [tuple(o.shape) for o in out]
    # bf16 operands + approx reciprocal in the softmax -> slightly looser tol.
    for o, r in zip(out, ref):
        np.testing.assert_allclose(np.asarray(o), np.asarray(r),
                                   rtol=2e-2, atol=2e-2)
    print("KERNEL_OK")
</pallas_src>

<mosaic_0001>
module attributes {stable_mosaic.version = 11 : i64} {
  func.func @_matmul_bn_act_kernel(%arg0: i32, %arg1: memref<128x256xbf16, #tpu.memory_space<vmem>>, %arg2: memref<256x128xbf16, #tpu.memory_space<vmem>>, %arg3: memref<2x128xf32, #tpu.memory_space<vmem>>, %arg4: memref<128x128xbf16, #tpu.memory_space<vmem>>) attributes {dimension_semantics = [#tpu.dimension_semantics<parallel>], iteration_bounds = array<i64: 1>, scalar_prefetch = 0 : i64, scratch_operands = 0 : i64, tpu.core_type = #tpu.core_type<tc>, window_params = [{transform_indices = @transform_0, window_bounds = array<i64: 128, 256>}, {pipeline_mode = #tpu.pipeline_mode<synchronous>, transform_indices = @transform_1, window_bounds = array<i64: 256, 128>}, {pipeline_mode = #tpu.pipeline_mode<synchronous>, transform_indices = @transform_2, window_bounds = array<i64: 2, 128>}, {transform_indices = @transform_3, window_bounds = array<i64: 128, 128>}]} {
    %c0 = arith.constant 0 : index
    %c0_0 = arith.constant 0 : index
    %0 = vector.load %arg1[%c0, %c0_0] : memref<128x256xbf16, #tpu.memory_space<vmem>>, vector<128x256xbf16>
    %c0_1 = arith.constant 0 : index
    %c0_2 = arith.constant 0 : index
    %1 = vector.load %arg2[%c0_1, %c0_2] : memref<256x128xbf16, #tpu.memory_space<vmem>>, vector<256x128xbf16>
    %cst = arith.constant dense<0.000000e+00> : vector<128x128xf32>
    %2 = tpu.matmul %0, %1, %cst {dimension_numbers = #tpu.dot_dimension_numbers<[1], [0], [0], [1], [0, 0, 1, 1], [], []>} : vector<128x256xbf16>, vector<256x128xbf16>, vector<128x128xf32> -> vector<128x128xf32>
    %c0_3 = arith.constant 0 : index
    %c0_4 = arith.constant 0 : index
    %3 = vector.load %arg3[%c0_3, %c0_4] : memref<2x128xf32, #tpu.memory_space<vmem>>, vector<1x128xf32>
    %4 = vector.broadcast %3 : vector<1x128xf32> to vector<128x128xf32>
    %5 = arith.mulf %2, %4 : vector<128x128xf32>
    %c1 = arith.constant 1 : index
    %c0_5 = arith.constant 0 : index
    %6 = vector.load %arg3[%c1, %c0_5] : memref<2x128xf32, #tpu.memory_space<vmem>>, vector<1x128xf32>
    %7 = vector.broadcast %6 : vector<1x128xf32> to vector<128x128xf32>
    %8 = arith.addf %5, %7 : vector<128x128xf32>
    %9 = arith.negf %8 : vector<128x128xf32>
    %10 = math.exp %9 : vector<128x128xf32>
    %cst_6 = arith.constant 1.000000e+00 : f32
    %11 = vector.broadcast %cst_6 : f32 to vector<128x128xf32>
    %12 = arith.addf %11, %10 : vector<128x128xf32>
    %13 = arith.divf %11, %12 : vector<128x128xf32>
    %14 = arith.mulf %8, %13 : vector<128x128xf32>
    %15 = arith.truncf %14 : vector<128x128xf32> to vector<128x128xbf16>
    %c0_7 = arith.constant 0 : index
    %c0_8 = arith.constant 0 : index
    %16 = vector.load %arg4[%c0_7, %c0_8] : memref<128x128xbf16, #tpu.memory_space<vmem>>, vector<128x128xbf16>
    tpu.vector_store %arg4[%c0_7, %c0_8], %15 {strides = array<i32>} : memref<128x128xbf16, #tpu.memory_space<vmem>>, vector<128x128xbf16>,
    return
  }
  func.func @transform_0(%arg0: i32) -> (i32, i32) {
    %c0_i32 = arith.constant 0 : i32
    %c0_i32_0 = arith.constant 0 : i32
    return %arg0, %c0_i32 : i32, i32
  }
  func.func @transform_1(%arg0: i32) -> (i32, i32) {
    %c0_i32 = arith.constant 0 : i32
    %c0_i32_0 = arith.constant 0 : i32
    %c0_i32_1 = arith.constant 0 : i32
    return %c0_i32, %c0_i32_0 : i32, i32
  }
  func.func @transform_2(%arg0: i32) -> (i32, i32) {
    %c0_i32 = arith.constant 0 : i32
    %c0_i32_0 = arith.constant 0 : i32
    %c0_i32_1 = arith.constant 0 : i32
    return %c0_i32, %c0_i32_0 : i32, i32
  }
  func.func @transform_3(%arg0: i32) -> (i32, i32) {
    %c0_i32 = arith.constant 0 : i32
    %c0_i32_0 = arith.constant 0 : i32
    return %arg0, %c0_i32 : i32, i32
  }
}

</mosaic_0001>

<llo_original>
// kernel: tpu_custom_call.1
$region0: #{tpu_custom_call.1}
  #allocation0 [shape = 'u32[]', space=smem, size = 0x4, offset = 0x4, fixed_abs, tag = 'smem constant byte address 0x4 - core index']
  #allocation1 [shape = 'u32[72,128]{1,0:T(1,128)}', space=vmem, size = 0x9000, scoped, tag = 'internal scratch']
  %s0 = inlined_call_operand.hbm [shape: bf16[128,256], index: 0, kind: input, shape index: {}]
  %s1 = inlined_call_operand.hbm [shape: bf16[256,128], index: 1, kind: input, shape index: {}]
  %s2 = inlined_call_operand.hbm [shape: f32[2,128], index: 2, kind: input, shape index: {}]
  %s3 = inlined_call_operand.hbm [shape: bf16[128,128], index: 3, kind: output, shape index: {}]
  %s4 = sld [smem:[#allocation0]]
  $region34: #{tpu_custom_call.1} parent=0
    _
  %s6 = ssub.s32 1, %s4
  %s7 = scalar_select 0, %s6, %s4
  $region1: #{tpu_custom_call.1} parent=0
    #allocation2 [shape = 'u8[65536]{0}', space=vmem, size = 0x10000, scoped, tag = 'input window, operand 0, single buffered']
    #allocation3 [shape = 's32[1]{0}', space=sflag, size = 0x4, scoped, tag = 'scoped memory for tpu_custom_call.1']
    #allocation4 [shape = 's32[1]{0}', space=sflag, size = 0x4, scoped, tag = 'scoped memory for tpu_custom_call.1']
    #allocation5 [shape = 'u8[65536]{0}', space=vmem, size = 0x10000, scoped, tag = 'input window, operand 1, single buffered']
    #allocation6 [shape = 's32[1]{0}', space=sflag, size = 0x4, scoped, tag = 'scoped memory for tpu_custom_call.1']
    #allocation7 [shape = 'u8[1024]{0}', space=vmem, size = 0x400, scoped, tag = 'input window, operand 2, single buffered']
    #allocation8 [shape = 'u8[32768]{0}', space=vmem, size = 0x8000, scoped, tag = 'output window, operand 0, single buffered']
    %8 = vsyncpa [#allocation3], 0
    %9 = vsyncpa [#allocation6], 0
    %10 = vsyncpa [#allocation4], 0
    // Predicated region
    $region2: #{tpu_custom_call.1} parent=1 // pred_check
      _
    $region3: #{tpu_custom_call.1} parent=1 // pred_check_branch
      %12 = sbr.rel (0) target = $region5
    $region4: #{tpu_custom_call.1} parent=1 // pred_region
      %14 = vsyncadd [#allocation3], 0
      %s15 = sshll.u32 %s0, 4
      %s16 = int_to_ptr.hbm [resolvable:$true] %s15
      %s17 = sshll.u32 [#allocation2], 4
      %s18 = int_to_ptr.vmem [resolvable:$true] %s17
      %23 = dma.hbm_to_vmem [thread:$0]  %s16, 2048, %s18, [#allocation3], 128, 128, 8
    $region5: #{tpu_custom_call.1} parent=1 // pred_fallthru
      _
    // Predicated region
    $region6: #{tpu_custom_call.1} parent=1 // pred_check
      _
    $region7: #{tpu_custom_call.1} parent=1 // pred_check_branch
      %25 = sbr.rel (0) target = $region9
    $region8: #{tpu_custom_call.1} parent=1 // pred_region
      %27 = vsyncadd [#allocation6], 0
      %s28 = sshll.u32 %s1, 4
      %s29 = int_to_ptr.hbm [resolvable:$true] %s28
      %s30 = sshll.u32 [#allocation5], 4
      %s31 = int_to_ptr.vmem [resolvable:$true] %s30
      %36 = dma.hbm_to_vmem [thread:$0]  %s29, 2048, %s31, [#allocation6], 64, 64, 4
    $region9: #{tpu_custom_call.1} parent=1 // pred_fallthru
      _
    // Predicated region
    $region10: #{tpu_custom_call.1} parent=1 // pred_check
      _
    $region11: #{tpu_custom_call.1} parent=1 // pred_check_branch
      %38 = sbr.rel (0) target = $region13
    $region12: #{tpu_custom_call.1} parent=1 // pred_region
      %40 = vsyncadd [#allocation6], 0
      %s42 = sshll.u32 %s2, 4
      %s43 = int_to_ptr.hbm [resolvable:$true] %s42
      %s44 = sshll.u32 [#allocation7], 4
      %s45 = int_to_ptr.vmem [resolvable:$true] %s44
      %47 = dma.hbm_to_vmem [thread:$0]  %s43, 32, %s45, [#allocation6]
    $region13: #{tpu_custom_call.1} parent=1 // pred_fallthru
      _
    // Predicated region
    $region14: #{tpu_custom_call.1} parent=1 // pred_check
      _
    $region15: #{tpu_custom_call.1} parent=1 // pred_check_branch
      %49 = sbr.rel (0) target = $region17
    $region16: #{tpu_custom_call.1} parent=1 // pred_region
      %51 = dma.done [#allocation3], 2048
    $region17: #{tpu_custom_call.1} parent=1 // pred_fallthru
      _
    // Predicated region
    $region18: #{tpu_custom_call.1} parent=1 // pred_check
      _
    $region19: #{tpu_custom_call.1} parent=1 // pred_check_branch
      %53 = sbr.rel (0) target = $region21
    $region20: #{tpu_custom_call.1} parent=1 // pred_region
      %55 = dma.done [#allocation6], 2048
    $region21: #{tpu_custom_call.1} parent=1 // pred_fallthru
      _
    // Predicated region
    $region22: #{tpu_custom_call.1} parent=1 // pred_check
      _
    $region23: #{tpu_custom_call.1} parent=1 // pred_check_branch
      %57 = sbr.rel (0) target = $region25
    $region24: #{tpu_custom_call.1} parent=1 // pred_region
      %59 = dma.done [#allocation6], 32
    $region25: #{tpu_custom_call.1} parent=1 // pred_fallthru
      _
    %v60 = vld [vmem:[#allocation2] sm:$0xff]
    %v61 = vld [vmem:[#allocation2 + $0x8] sm:$0xff]
    %v62 = vld [vmem:[#allocation2 + $0x10] sm:$0xff]
    %v63 = vld [vmem:[#allocation2 + $0x18] sm:$0xff]
    %v64 = vld [vmem:[#allocation2 + $0x20] sm:$0xff]
    %v65 = vld [vmem:[#allocation2 + $0x28] sm:$0xff]
    %v66 = vld [vmem:[#allocation2 + $0x30] sm:$0xff]
    %v67 = vld [vmem:[#allocation2 + $0x38] sm:$0xff]
    %v68 = vld [vmem:[#allocation2 + $0x40] sm:$0xff]
    %v69 = vld [vmem:[#allocation2 + $0x48] sm:$0xff]
    %v70 = vld [vmem:[#allocation2 + $0x50] sm:$0xff]
    %v71 = vld [vmem:[#allocation2 + $0x58] sm:$0xff]
    %v72 = vld [vmem:[#allocation2 + $0x60] sm:$0xff]
    %v73 = vld [vmem:[#allocation2 + $0x68] sm:$0xff]
    %v74 = vld [vmem:[#allocation2 + $0x70] sm:$0xff]
    %v75 = vld [vmem:[#allocation2 + $0x78] sm:$0xff]
    %v76 = vld [vmem:[#allocation5] sm:$0xf]
    %v77 = vld [vmem:[#allocation5 + $0x4] sm:$0xf]
    %v78 = vld [vmem:[#allocation5 + $0x8] sm:$0xf]
    %v79 = vld [vmem:[#allocation5 + $0xc] sm:$0xf]
    %v80 = vld [vmem:[#allocation5 + $0x10] sm:$0xf]
    %v81 = vld [vmem:[#allocation5 + $0x14] sm:$0xf]
    %v82 = vld [vmem:[#allocation5 + $0x18] sm:$0xf]
    %v83 = vld [vmem:[#allocation5 + $0x1c] sm:$0xf]
    %v84 = vld [vmem:[#allocation5 + $0x20] sm:$0xf]
    %v85 = vld [vmem:[#allocation5 + $0x24] sm:$0xf]
    %v86 = vld [vmem:[#allocation5 + $0x28] sm:$0xf]
    %v87 = vld [vmem:[#allocation5 + $0x2c] sm:$0xf]
    %v88 = vld [vmem:[#allocation5 + $0x30] sm:$0xf]
    %v89 = vld [vmem:[#allocation5 + $0x34] sm:$0xf]
    %v90 = vld [vmem:[#allocation5 + $0x38] sm:$0xf]
    %v91 = vld [vmem:[#allocation5 + $0x3c] sm:$0xf]
    %v92 = vld [vmem:[#allocation5 + $0x40] sm:$0xf]
    %v93 = vld [vmem:[#allocation5 + $0x44] sm:$0xf]
    %v94 = vld [vmem:[#allocation5 + $0x48] sm:$0xf]
    %v95 = vld [vmem:[#allocation5 + $0x4c] sm:$0xf]
    %v96 = vld [vmem:[#allocation5 + $0x50] sm:$0xf]
    %v97 = vld [vmem:[#allocation5 + $0x54] sm:$0xf]
    %v98 = vld [vmem:[#allocation5 + $0x58] sm:$0xf]
    %v99 = vld [vmem:[#allocation5 + $0x5c] sm:$0xf]
    %v100 = vld [vmem:[#allocation5 + $0x60] sm:$0xf]
    %v101 = vld [vmem:[#allocation5 + $0x64] sm:$0xf]
    %v102 = vld [vmem:[#allocation5 + $0x68] sm:$0xf]
    %v103 = vld [vmem:[#allocation5 + $0x6c] sm:$0xf]
    %v104 = vld [vmem:[#allocation5 + $0x70] sm:$0xf]
    %v105 = vld [vmem:[#allocation5 + $0x74] sm:$0xf]
    %v106 = vld [vmem:[#allocation5 + $0x78] sm:$0xf]
    %v107 = vld [vmem:[#allocation5 + $0x7c] sm:$0xf]
    %v124 = vunpack.c.l.b16 %v60
    %v125 = vunpack.c.h.b16 %v60
    %v126 = vunpack.c.l.b16 %v61
    %v127 = vunpack.c.h.b16 %v61
    %v128 = vunpack.c.l.b16 %v62
    %v129 = vunpack.c.h.b16 %v62
    %v130 = vunpack.c.l.b16 %v63
    %v131 = vunpack.c.h.b16 %v63
    %v132 = vunpack.c.l.b16 %v64
    %v133 = vunpack.c.h.b16 %v64
    %v134 = vunpack.c.l.b16 %v65
    %v135 = vunpack.c.h.b16 %v65
    %v136 = vunpack.c.l.b16 %v66
    %v137 = vunpack.c.h.b16 %v66
    %v138 = vunpack.c.l.b16 %v67
    %v139 = vunpack.c.h.b16 %v67
    %v140 = vunpack.c.l.b16 %v68
    %v141 = vunpack.c.h.b16 %v68
    %v142 = vunpack.c.l.b16 %v69
    %v143 = vunpack.c.h.b16 %v69
    %v144 = vunpack.c.l.b16 %v70
    %v145 = vunpack.c.h.b16 %v70
    %v146 = vunpack.c.l.b16 %v71
    %v147 = vunpack.c.h.b16 %v71
    %v148 = vunpack.c.l.b16 %v72
    %v149 = vunpack.c.h.b16 %v72
    %v150 = vunpack.c.l.b16 %v73
    %v151 = vunpack.c.h.b16 %v73
    %v152 = vunpack.c.l.b16 %v74
    %v153 = vunpack.c.h.b16 %v74
    %v154 = vunpack.c.l.b16 %v75
    %v155 = vunpack.c.h.b16 %v75
    %v156 = vpack.c.b16 %v126, %v124
    %v157 = vpack.c.b16 %v127, %v125
    %v158 = vpack.c.b16 %v130, %v128
    %v159 = vpack.c.b16 %v131, %v129
    %v160 = vpack.c.b16 %v134, %v132
    %v161 = vpack.c.b16 %v135, %v133
    %v162 = vpack.c.b16 %v138, %v136
    %v163 = vpack.c.b16 %v139, %v137
    %v164 = vpack.c.b16 %v142, %v140
    %v165 = vpack.c.b16 %v143, %v141
    %v166 = vpack.c.b16 %v146, %v144
    %v167 = vpack.c.b16 %v147, %v145
    %v168 = vpack.c.b16 %v150, %v148
    %v169 = vpack.c.b16 %v151, %v149
    %v170 = vpack.c.b16 %v154, %v152
    %v171 = vpack.c.b16 %v155, %v153
    %v220 = vunpack.c.l.b16 %v76
    %v221 = vunpack.c.l.b16 %v77
    %v222 = vunpack.c.l.b16 %v78
    %v223 = vunpack.c.l.b16 %v79
    %v224 = vunpack.c.l.b16 %v80
    %v225 = vunpack.c.l.b16 %v81
    %v226 = vunpack.c.l.b16 %v82
    %v227 = vunpack.c.l.b16 %v83
    %v228 = vunpack.c.l.b16 %v84
    %v229 = vunpack.c.l.b16 %v85
    %v230 = vunpack.c.l.b16 %v86
    %v231 = vunpack.c.l.b16 %v87
    %v232 = vunpack.c.l.b16 %v88
    %v233 = vunpack.c.l.b16 %v89
    %v234 = vunpack.c.l.b16 %v90
    %v235 = vunpack.c.l.b16 %v91
    %v236 = vunpack.c.l.b16 %v92
    %v237 = vunpack.c.l.b16 %v93
    %v238 = vunpack.c.l.b16 %v94
    %v239 = vunpack.c.l.b16 %v95
    %v240 = vunpack.c.l.b16 %v96
    %v241 = vunpack.c.l.b16 %v97
    %v242 = vunpack.c.l.b16 %v98
    %v243 = vunpack.c.l.b16 %v99
    %v244 = vunpack.c.l.b16 %v100
    %v245 = vunpack.c.l.b16 %v101
    %v246 = vunpack.c.l.b16 %v102
    %v247 = vunpack.c.l.b16 %v103
    %v248 = vunpack.c.l.b16 %v104
    %v249 = vunpack.c.l.b16 %v105
    %v250 = vunpack.c.l.b16 %v106
    %v251 = vunpack.c.l.b16 %v107
    %v252 = vpack.c.b16 %v221, %v220
    %v253 = vpack.c.b16 %v223, %v222
    %v254 = vpack.c.b16 %v225, %v224
    %v255 = vpack.c.b16 %v227, %v226
    %v256 = vpack.c.b16 %v229, %v228
    %v257 = vpack.c.b16 %v231, %v230
    %v258 = vpack.c.b16 %v233, %v232
    %v259 = vpack.c.b16 %v235, %v234
    %v260 = vpack.c.b16 %v237, %v236
    %v261 = vpack.c.b16 %v239, %v238
    %v262 = vpack.c.b16 %v241, %v240
    %v263 = vpack.c.b16 %v243, %v242
    %v264 = vpack.c.b16 %v245, %v244
    %v265 = vpack.c.b16 %v247, %v246
    %v266 = vpack.c.b16 %v249, %v248
    %v267 = vpack.c.b16 %v251, %v250
    %284 = vmatpush.bf16.msra.mxu0 %v259
    %285 = vmatpush.bf16.msra.mxu0 %v258
    %286 = vmatpush.bf16.msra.mxu0 %v257
    %287 = vmatpush.bf16.msra.mxu0 %v256
    %288 = vmatpush.bf16.msra.mxu0 %v255
    %289 = vmatpush.bf16.msra.mxu0 %v254
    %290 = vmatpush.bf16.msra.mxu0 %v253
    %291 = vmatpush.bf16.msra.mxu0 %v252
    %292 = vmatmul.bf16.gmra.mxu0 %v156
    %v293 = vpop.f32.mrf.mxu0
    %v294 = vadd.f32 0.0, %v293
    %v295 = vpop.f32.mrf.mxu0
    %v296 = vadd.f32 0.0, %v295
    %297 = vmatmul.bf16.gmra.mxu0 %v158
    %v298 = vpop.f32.mrf.mxu0
    %v299 = vadd.f32 0.0, %v298
    %v300 = vpop.f32.mrf.mxu0
    %v301 = vadd.f32 0.0, %v300
    %302 = vmatmul.bf16.gmra.mxu0 %v160
    %v303 = vpop.f32.mrf.mxu0
    %v304 = vadd.f32 0.0, %v303
    %v305 = vpop.f32.mrf.mxu0
    %v306 = vadd.f32 0.0, %v305
    %307 = vmatmul.bf16.gmra.mxu0 %v162
    %v308 = vpop.f32.mrf.mxu0
    %v309 = vadd.f32 0.0, %v308
    %v310 = vpop.f32.mrf.mxu0
    %v311 = vadd.f32 0.0, %v310
    %312 = vmatmul.bf16.gmra.mxu0 %v164
    %v313 = vpop.f32.mrf.mxu0
    %v314 = vadd.f32 0.0, %v313
    %v315 = vpop.f32.mrf.mxu0
    %v316 = vadd.f32 0.0, %v315
    %317 = vmatmul.bf16.gmra.mxu0 %v166
    %v318 = vpop.f32.mrf.mxu0
    %v319 = vadd.f32 0.0, %v318
    %v320 = vpop.f32.mrf.mxu0
    %v321 = vadd.f32 0.0, %v320
    %322 = vmatmul.bf16.gmra.mxu0 %v168
    %v323 = vpop.f32.mrf.mxu0
    %v324 = vadd.f32 0.0, %v323
    %v325 = vpop.f32.mrf.mxu0
    %v326 = vadd.f32 0.0, %v325
    %327 = vmatmul.bf16.gmra.mxu0 %v170
    %v328 = vpop.f32.mrf.mxu0
    %v329 = vadd.f32 0.0, %v328
    %v330 = vpop.f32.mrf.mxu0
    %v331 = vadd.f32 0.0, %v330
    %332 = vdwg.mxu0
    %333 = vmatpush.bf16.msra.mxu0 %v267
    %334 = vmatpush.bf16.msra.mxu0 %v266
    %335 = vmatpush.bf16.msra.mxu0 %v265
    %336 = vmatpush.bf16.msra.mxu0 %v264
    %337 = vmatpush.bf16.msra.mxu0 %v263
    %338 = vmatpush.bf16.msra.mxu0 %v262
    %339 = vmatpush.bf16.msra.mxu0 %v261
    %340 = vmatpush.bf16.msra.mxu0 %v260
    %341 = vmatmul.bf16.gmra.mxu0 %v157
    %v342 = vpop.f32.mrf.mxu0
    %v343 = vadd.f32 %v294, %v342
    %v344 = vpop.f32.mrf.mxu0
    %v345 = vadd.f32 %v296, %v344
    %346 = vmatmul.bf16.gmra.mxu0 %v159
    %v347 = vpop.f32.mrf.mxu0
    %v348 = vadd.f32 %v299, %v347
    %v349 = vpop.f32.mrf.mxu0
    %v350 = vadd.f32 %v301, %v349
    %351 = vmatmul.bf16.gmra.mxu0 %v161
    %v352 = vpop.f32.mrf.mxu0
    %v353 = vadd.f32 %v304, %v352
    %v354 = vpop.f32.mrf.mxu0
    %v355 = vadd.f32 %v306, %v354
    %356 = vmatmul.bf16.gmra.mxu0 %v163
    %v357 = vpop.f32.mrf.mxu0
    %v358 = vadd.f32 %v309, %v357
    %v359 = vpop.f32.mrf.mxu0
    %v360 = vadd.f32 %v311, %v359
    %361 = vmatmul.bf16.gmra.mxu0 %v165
    %v362 = vpop.f32.mrf.mxu0
    %v363 = vadd.f32 %v314, %v362
    %v364 = vpop.f32.mrf.mxu0
    %v365 = vadd.f32 %v316, %v364
    %366 = vmatmul.bf16.gmra.mxu0 %v167
    %v367 = vpop.f32.mrf.mxu0
    %v368 = vadd.f32 %v319, %v367
    %v369 = vpop.f32.mrf.mxu0
    %v370 = vadd.f32 %v321, %v369
    %371 = vmatmul.bf16.gmra.mxu0 %v169
    %v372 = vpop.f32.mrf.mxu0
    %v373 = vadd.f32 %v324, %v372
    %v374 = vpop.f32.mrf.mxu0
    %v375 = vadd.f32 %v326, %v374
    %376 = vmatmul.bf16.gmra.mxu0 %v171
    %v377 = vpop.f32.mrf.mxu0
    %v378 = vadd.f32 %v329, %v377
    %v379 = vpop.f32.mrf.mxu0
    %v380 = vadd.f32 %v331, %v379
    %381 = vdwg.mxu0
    %v382 = vld [vmem:[#allocation7] sm:$0x1]
    %v383 = vperm.slane %v382, 0
    %v384 = vmul.f32 %v343, %v383
    %v385 = vmul.f32 %v345, %v383
    %v386 = vmul.f32 %v348, %v383
    %v387 = vmul.f32 %v350, %v383
    %v388 = vmul.f32 %v353, %v383
    %v389 = vmul.f32 %v355, %v383
    %v390 = vmul.f32 %v358, %v383
    %v391 = vmul.f32 %v360, %v383
    %v392 = vmul.f32 %v363, %v383
    %v393 = vmul.f32 %v365, %v383
    %v394 = vmul.f32 %v368, %v383
    %v395 = vmul.f32 %v370, %v383
    %v396 = vmul.f32 %v373, %v383
    %v397 = vmul.f32 %v375, %v383
    %v398 = vmul.f32 %v378, %v383
    %v399 = vmul.f32 %v380, %v383
    %v400 = vld [vmem:[#allocation7 + $0x1] sm:$0x1]
    %v401 = vperm.slane %v400, 0
    %v402 = vadd.f32 %v384, %v401
    %v403 = vadd.f32 %v385, %v401
    %v404 = vadd.f32 %v386, %v401
    %v405 = vadd.f32 %v387, %v401
    %v406 = vadd.f32 %v388, %v401
    %v407 = vadd.f32 %v389, %v401
    %v408 = vadd.f32 %v390, %v401
    %v409 = vadd.f32 %v391, %v401
    %v410 = vadd.f32 %v392, %v401
    %v411 = vadd.f32 %v393, %v401
    %v412 = vadd.f32 %v394, %v401
    %v413 = vadd.f32 %v395, %v401
    %v414 = vadd.f32 %v396, %v401
    %v415 = vadd.f32 %v397, %v401
    %v416 = vadd.f32 %v398, %v401
    %v417 = vadd.f32 %v399, %v401
    %v418 = vxor.u32 %v402, 2147483648
    %v419 = vxor.u32 %v403, 2147483648
    %v420 = vxor.u32 %v404, 2147483648
    %v421 = vxor.u32 %v405, 2147483648
    %v422 = vxor.u32 %v406, 2147483648
    %v423 = vxor.u32 %v407, 2147483648
    %v424 = vxor.u32 %v408, 2147483648
    %v425 = vxor.u32 %v409, 2147483648
    %v426 = vxor.u32 %v410, 2147483648
    %v427 = vxor.u32 %v411, 2147483648
    %v428 = vxor.u32 %v412, 2147483648
    %v429 = vxor.u32 %v413, 2147483648
    %v430 = vxor.u32 %v414, 2147483648
    %v431 = vxor.u32 %v415, 2147483648
    %v432 = vxor.u32 %v416, 2147483648
    %v433 = vxor.u32 %v417, 2147483648
    %v434 = vmul.f32 %v418, 1.442695
    %v435 = vpow.pop %v434
    %v436 = vmul.f32 %v419, 1.442695
    %v437 = vpow.pop %v436
    %v438 = vmul.f32 %v420, 1.442695
    %v439 = vpow.pop %v438
    %v440 = vmul.f32 %v421, 1.442695
    %v441 = vpow.pop %v440
    %v442 = vmul.f32 %v422, 1.442695
    %v443 = vpow.pop %v442
    %v444 = vmul.f32 %v423, 1.442695
    %v445 = vpow.pop %v444
    %v446 = vmul.f32 %v424, 1.442695
    %v447 = vpow.pop %v446
    %v448 = vmul.f32 %v425, 1.442695
    %v449 = vpow.pop %v448
    %v450 = vmul.f32 %v426, 1.442695
    %v451 = vpow.pop %v450
    %v452 = vmul.f32 %v427, 1.442695
    %v453 = vpow.pop %v452
    %v454 = vmul.f32 %v428, 1.442695
    %v455 = vpow.pop %v454
    %v456 = vmul.f32 %v429, 1.442695
    %v457 = vpow.pop %v456
    %v458 = vmul.f32 %v430, 1.442695
    %v459 = vpow.pop %v458
    %v460 = vmul.f32 %v431, 1.442695
    %v461 = vpow.pop %v460
    %v462 = vmul.f32 %v432, 1.442695
    %v463 = vpow.pop %v462
    %v464 = vmul.f32 %v433, 1.442695
    %v465 = vpow.pop %v464
    %v466 = vadd.f32 %v435, 1.0
    %v467 = vadd.f32 %v437, 1.0
    %v468 = vadd.f32 %v439, 1.0
    %v469 = vadd.f32 %v441, 1.0
    %v470 = vadd.f32 %v443, 1.0
    %v471 = vadd.f32 %v445, 1.0
    %v472 = vadd.f32 %v447, 1.0
    %v473 = vadd.f32 %v449, 1.0
    %v474 = vadd.f32 %v451, 1.0
    %v475 = vadd.f32 %v453, 1.0
    %v476 = vadd.f32 %v455, 1.0
    %v477 = vadd.f32 %v457, 1.0
    %v478 = vadd.f32 %v459, 1.0
    %v479 = vadd.f32 %v461, 1.0
    %v480 = vadd.f32 %v463, 1.0
    %v481 = vadd.f32 %v465, 1.0
    %v482 = vrcp.pop %v466
    %v483 = vmul.f32 %v466, %v482
    %v484 = vsub.f32 1.0, %v483
    %v485 = vmul.f32 %v482, %v484
    %v486 = vadd.f32 %v482, %v485
    %vm487 = vweird.f32 %v466
    %vm488 = vweird.f32 %v482
    %vm489 = vmor %vm487, %vm488
    %v490 = vsel %vm489, %v482, %v486
    %v491 = vand.u32 2147483647, %v466
    %vm492 = vcmp.eq.f32.partialorder %v491, 8.507059e+37
    %v493 = vand.u32 %v466, 2147483648
    %v494 = vor.u32 1.1754944e-38, %v493
    %v495 = vsel %vm492, %v494, %v490
    %v496 = vmul.f32 1.0, %v495
    %v497 = vrcp.pop %v467
    %v498 = vmul.f32 %v467, %v497
    %v499 = vsub.f32 1.0, %v498
    %v500 = vmul.f32 %v497, %v499
    %v501 = vadd.f32 %v497, %v500
    %vm502 = vweird.f32 %v467
    %vm503 = vweird.f32 %v497
    %vm504 = vmor %vm502, %vm503
    %v505 = vsel %vm504, %v497, %v501
    %v506 = vand.u32 2147483647, %v467
    %vm507 = vcmp.eq.f32.partialorder %v506, 8.507059e+37
    %v508 = vand.u32 %v467, 2147483648
    %v509 = vor.u32 1.1754944e-38, %v508
    %v510 = vsel %vm507, %v509, %v505
    %v511 = vmul.f32 1.0, %v510
    %v512 = vrcp.pop %v468
    %v513 = vmul.f32 %v468, %v512
    %v514 = vsub.f32 1.0, %v513
    %v515 = vmul.f32 %v512, %v514
    %v516 = vadd.f32 %v512, %v515
    %vm517 = vweird.f32 %v468
    %vm518 = vweird.f32 %v512
    %vm519 = vmor %vm517, %vm518
    %v520 = vsel %vm519, %v512, %v516
    %v521 = vand.u32 2147483647, %v468
    %vm522 = vcmp.eq.f32.partialorder %v521, 8.507059e+37
    %v523 = vand.u32 %v468, 2147483648
    %v524 = vor.u32 1.1754944e-38, %v523
    %v525 = vsel %vm522, %v524, %v520
    %v526 = vmul.f32 1.0, %v525
    %v527 = vrcp.pop %v469
    %v528 = vmul.f32 %v469, %v527
    %v529 = vsub.f32 1.0, %v528
    %v530 = vmul.f32 %v527, %v529
    %v531 = vadd.f32 %v527, %v530
    %vm532 = vweird.f32 %v469
    %vm533 = vweird.f32 %v527
    %vm534 = vmor %vm532, %vm533
    %v535 = vsel %vm534, %v527, %v531
    %v536 = vand.u32 2147483647, %v469
    %vm537 = vcmp.eq.f32.partialorder %v536, 8.507059e+37
    %v538 = vand.u32 %v469, 2147483648
    %v539 = vor.u32 1.1754944e-38, %v538
    %v540 = vsel %vm537, %v539, %v535
    %v541 = vmul.f32 1.0, %v540
    %v542 = vrcp.pop %v470
    %v543 = vmul.f32 %v470, %v542
    %v544 = vsub.f32 1.0, %v543
    %v545 = vmul.f32 %v542, %v544
    %v546 = vadd.f32 %v542, %v545
    %vm547 = vweird.f32 %v470
    %vm548 = vweird.f32 %v542
    %vm549 = vmor %vm547, %vm548
    %v550 = vsel %vm549, %v542, %v546
    %v551 = vand.u32 2147483647, %v470
    %vm552 = vcmp.eq.f32.partialorder %v551, 8.507059e+37
    %v553 = vand.u32 %v470, 2147483648
    %v554 = vor.u32 1.1754944e-38, %v553
    %v555 = vsel %vm552, %v554, %v550
    %v556 = vmul.f32 1.0, %v555
    %v557 = vrcp.pop %v471
    %v558 = vmul.f32 %v471, %v557
    %v559 = vsub.f32 1.0, %v558
    %v560 = vmul.f32 %v557, %v559
    %v561 = vadd.f32 %v557, %v560
    %vm562 = vweird.f32 %v471
    %vm563 = vweird.f32 %v557
    %vm564 = vmor %vm562, %vm563
    %v565 = vsel %vm564, %v557, %v561
    %v566 = vand.u32 2147483647, %v471
    %vm567 = vcmp.eq.f32.partialorder %v566, 8.507059e+37
    %v568 = vand.u32 %v471, 2147483648
    %v569 = vor.u32 1.1754944e-38, %v568
    %v570 = vsel %vm567, %v569, %v565
    %v571 = vmul.f32 1.0, %v570
    %v572 = vrcp.pop %v472
    %v573 = vmul.f32 %v472, %v572
    %v574 = vsub.f32 1.0, %v573
    %v575 = vmul.f32 %v572, %v574
    %v576 = vadd.f32 %v572, %v575
    %vm577 = vweird.f32 %v472
    %vm578 = vweird.f32 %v572
    %vm579 = vmor %vm577, %vm578
    %v580 = vsel %vm579, %v572, %v576
    %v581 = vand.u32 2147483647, %v472
    %vm582 = vcmp.eq.f32.partialorder %v581, 8.507059e+37
    %v583 = vand.u32 %v472, 2147483648
    %v584 = vor.u32 1.1754944e-38, %v583
    %v585 = vsel %vm582, %v584, %v580
    %v586 = vmul.f32 1.0, %v585
    %v587 = vrcp.pop %v473
    %v588 = vmul.f32 %v473, %v587
    %v589 = vsub.f32 1.0, %v588
    %v590 = vmul.f32 %v587, %v589
    %v591 = vadd.f32 %v587, %v590
    %vm592 = vweird.f32 %v473
    %vm593 = vweird.f32 %v587
    %vm594 = vmor %vm592, %vm593
    %v595 = vsel %vm594, %v587, %v591
    %v596 = vand.u32 2147483647, %v473
    %vm597 = vcmp.eq.f32.partialorder %v596, 8.507059e+37
    %v598 = vand.u32 %v473, 2147483648
    %v599 = vor.u32 1.1754944e-38, %v598
    %v600 = vsel %vm597, %v599, %v595
    %v601 = vmul.f32 1.0, %v600
    %v602 = vrcp.pop %v474
    %v603 = vmul.f32 %v474, %v602
    %v604 = vsub.f32 1.0, %v603
    %v605 = vmul.f32 %v602, %v604
    %v606 = vadd.f32 %v602, %v605
    %vm607 = vweird.f32 %v474
    %vm608 = vweird.f32 %v602
    %vm609 = vmor %vm607, %vm608
    %v610 = vsel %vm609, %v602, %v606
    %v611 = vand.u32 2147483647, %v474
    %vm612 = vcmp.eq.f32.partialorder %v611, 8.507059e+37
    %v613 = vand.u32 %v474, 2147483648
    %v614 = vor.u32 1.1754944e-38, %v613
    %v615 = vsel %vm612, %v614, %v610
    %v616 = vmul.f32 1.0, %v615
    %v617 = vrcp.pop %v475
    %v618 = vmul.f32 %v475, %v617
    %v619 = vsub.f32 1.0, %v618
    %v620 = vmul.f32 %v617, %v619
    %v621 = vadd.f32 %v617, %v620
    %vm622 = vweird.f32 %v475
    %vm623 = vweird.f32 %v617
    %vm624 = vmor %vm622, %vm623
    %v625 = vsel %vm624, %v617, %v621
    %v626 = vand.u32 2147483647, %v475
    %vm627 = vcmp.eq.f32.partialorder %v626, 8.507059e+37
    %v628 = vand.u32 %v475, 2147483648
    %v629 = vor.u32 1.1754944e-38, %v628
    %v630 = vsel %vm627, %v629, %v625
    %v631 = vmul.f32 1.0, %v630
    %v632 = vrcp.pop %v476
    %v633 = vmul.f32 %v476, %v632
    %v634 = vsub.f32 1.0, %v633
    %v635 = vmul.f32 %v632, %v634
    %v636 = vadd.f32 %v632, %v635
    %vm637 = vweird.f32 %v476
    %vm638 = vweird.f32 %v632
    %vm639 = vmor %vm637, %vm638
    %v640 = vsel %vm639, %v632, %v636
    %v641 = vand.u32 2147483647, %v476
    %vm642 = vcmp.eq.f32.partialorder %v641, 8.507059e+37
    %v643 = vand.u32 %v476, 2147483648
    %v644 = vor.u32 1.1754944e-38, %v643
    %v645 = vsel %vm642, %v644, %v640
    %v646 = vmul.f32 1.0, %v645
    %v647 = vrcp.pop %v477
    %v648 = vmul.f32 %v477, %v647
    %v649 = vsub.f32 1.0, %v648
    %v650 = vmul.f32 %v647, %v649
    %v651 = vadd.f32 %v647, %v650
    %vm652 = vweird.f32 %v477
    %vm653 = vweird.f32 %v647
    %vm654 = vmor %vm652, %vm653
    %v655 = vsel %vm654, %v647, %v651
    %v656 = vand.u32 2147483647, %v477
    %vm657 = vcmp.eq.f32.partialorder %v656, 8.507059e+37
    %v658 = vand.u32 %v477, 2147483648
    %v659 = vor.u32 1.1754944e-38, %v658
    %v660 = vsel %vm657, %v659, %v655
    %v661 = vmul.f32 1.0, %v660
    %v662 = vrcp.pop %v478
    %v663 = vmul.f32 %v478, %v662
    %v664 = vsub.f32 1.0, %v663
    %v665 = vmul.f32 %v662, %v664
    %v666 = vadd.f32 %v662, %v665
    %vm667 = vweird.f32 %v478
    %vm668 = vweird.f32 %v662
    %vm669 = vmor %vm667, %vm668
    %v670 = vsel %vm669, %v662, %v666
    %v671 = vand.u32 2147483647, %v478
    %vm672 = vcmp.eq.f32.partialorder %v671, 8.507059e+37
    %v673 = vand.u32 %v478, 2147483648
    %v674 = vor.u32 1.1754944e-38, %v673
    %v675 = vsel %vm672, %v674, %v670
    %v676 = vmul.f32 1.0, %v675
    %v677 = vrcp.pop %v479
    %v678 = vmul.f32 %v479, %v677
    %v679 = vsub.f32 1.0, %v678
    %v680 = vmul.f32 %v677, %v679
    %v681 = vadd.f32 %v677, %v680
    %vm682 = vweird.f32 %v479
    %vm683 = vweird.f32 %v677
    %vm684 = vmor %vm682, %vm683
    %v685 = vsel %vm684, %v677, %v681
    %v686 = vand.u32 2147483647, %v479
    %vm687 = vcmp.eq.f32.partialorder %v686, 8.507059e+37
    %v688 = vand.u32 %v479, 2147483648
    %v689 = vor.u32 1.1754944e-38, %v688
    %v690 = vsel %vm687, %v689, %v685
    %v691 = vmul.f32 1.0, %v690
    %v692 = vrcp.pop %v480
    %v693 = vmul.f32 %v480, %v692
    %v694 = vsub.f32 1.0, %v693
    %v695 = vmul.f32 %v692, %v694
    %v696 = vadd.f32 %v692, %v695
    %vm697 = vweird.f32 %v480
    %vm698 = vweird.f32 %v692
    %vm699 = vmor %vm697, %vm698
    %v700 = vsel %vm699, %v692, %v696
    %v701 = vand.u32 2147483647, %v480
    %vm702 = vcmp.eq.f32.partialorder %v701, 8.507059e+37
    %v703 = vand.u32 %v480, 2147483648
    %v704 = vor.u32 1.1754944e-38, %v703
    %v705 = vsel %vm702, %v704, %v700
    %v706 = vmul.f32 1.0, %v705
    %v707 = vrcp.pop %v481
    %v708 = vmul.f32 %v481, %v707
    %v709 = vsub.f32 1.0, %v708
    %v710 = vmul.f32 %v707, %v709
    %v711 = vadd.f32 %v707, %v710
    %vm712 = vweird.f32 %v481
    %vm713 = vweird.f32 %v707
    %vm714 = vmor %vm712, %vm713
    %v715 = vsel %vm714, %v707, %v711
    %v716 = vand.u32 2147483647, %v481
    %vm717 = vcmp.eq.f32.partialorder %v716, 8.507059e+37
    %v718 = vand.u32 %v481, 2147483648
    %v719 = vor.u32 1.1754944e-38, %v718
    %v720 = vsel %vm717, %v719, %v715
    %v721 = vmul.f32 1.0, %v720
    %v722 = vmul.f32 %v402, %v496
    %v723 = vmul.f32 %v403, %v511
    %v724 = vmul.f32 %v404, %v526
    %v725 = vmul.f32 %v405, %v541
    %v726 = vmul.f32 %v406, %v556
    %v727 = vmul.f32 %v407, %v571
    %v728 = vmul.f32 %v408, %v586
    %v729 = vmul.f32 %v409, %v601
    %v730 = vmul.f32 %v410, %v616
    %v731 = vmul.f32 %v411, %v631
    %v732 = vmul.f32 %v412, %v646
    %v733 = vmul.f32 %v413, %v661
    %v734 = vmul.f32 %v414, %v676
    %v735 = vmul.f32 %v415, %v691
    %v736 = vmul.f32 %v416, %v706
    %v737 = vmul.f32 %v417, %v721
    %v738 = vpack.c.bf16 %v722, %v722
    %v739 = vpack.c.bf16 %v723, %v723
    %v740 = vpack.c.bf16 %v724, %v724
    %v741 = vpack.c.bf16 %v725, %v725
    %v742 = vpack.c.bf16 %v726, %v726
    %v743 = vpack.c.bf16 %v727, %v727
    %v744 = vpack.c.bf16 %v728, %v728
    %v745 = vpack.c.bf16 %v729, %v729
    %v746 = vpack.c.bf16 %v730, %v730
    %v747 = vpack.c.bf16 %v731, %v731
    %v748 = vpack.c.bf16 %v732, %v732
    %v749 = vpack.c.bf16 %v733, %v733
    %v750 = vpack.c.bf16 %v734, %v734
    %v751 = vpack.c.bf16 %v735, %v735
    %v752 = vpack.c.bf16 %v736, %v736
    %v753 = vpack.c.bf16 %v737, %v737
    %754 = vst [vmem:[#allocation8] sm:$0xf] %v738
    %755 = vst [vmem:[#allocation8 + $0x4] sm:$0xf] %v739
    %756 = vst [vmem:[#allocation8 + $0x8] sm:$0xf] %v740
    %757 = vst [vmem:[#allocation8 + $0xc] sm:$0xf] %v741
    %758 = vst [vmem:[#allocation8 + $0x10] sm:$0xf] %v742
    %759 = vst [vmem:[#allocation8 + $0x14] sm:$0xf] %v743
    %760 = vst [vmem:[#allocation8 + $0x18] sm:$0xf] %v744
    %761 = vst [vmem:[#allocation8 + $0x1c] sm:$0xf] %v745
    %762 = vst [vmem:[#allocation8 + $0x20] sm:$0xf] %v746
    %763 = vst [vmem:[#allocation8 + $0x24] sm:$0xf] %v747
    %764 = vst [vmem:[#allocation8 + $0x28] sm:$0xf] %v748
    %765 = vst [vmem:[#allocation8 + $0x2c] sm:$0xf] %v749
    %766 = vst [vmem:[#allocation8 + $0x30] sm:$0xf] %v750
    %767 = vst [vmem:[#allocation8 + $0x34] sm:$0xf] %v751
    %768 = vst [vmem:[#allocation8 + $0x38] sm:$0xf] %v752
    %769 = vst [vmem:[#allocation8 + $0x3c] sm:$0xf] %v753
    // Predicated region
    $region26: #{tpu_custom_call.1} parent=1 // pred_check
      _
    $region27: #{tpu_custom_call.1} parent=1 // pred_check_branch
      %771 = sbr.rel (0) target = $region29
    $region28: #{tpu_custom_call.1} parent=1 // pred_region
      %773 = vsyncadd [#allocation4], 0
      %s774 = sshll.u32 [#allocation8], 4
      %s775 = int_to_ptr.vmem [resolvable:$true] %s774
      %s776 = sshll.u32 %s3, 4
      %s777 = int_to_ptr.hbm [resolvable:$true] %s776
      %782 = dma.vmem_to_hbm [thread:$0]  %s775, 1024, %s777, [#allocation4], 64, 64, 4
    $region29: #{tpu_custom_call.1} parent=1 // pred_fallthru
      _
    // Predicated region
    $region30: #{tpu_custom_call.1} parent=1 // pred_check
      _
    $region31: #{tpu_custom_call.1} parent=1 // pred_check_branch
      %784 = sbr.rel (0) target = $region33
    $region32: #{tpu_custom_call.1} parent=1 // pred_region
      %786 = dma.done [#allocation4], 1024
    $region33: #{tpu_custom_call.1} parent=1 // pred_fallthru
      _
    %787 = vsyncpa [#allocation3], 1
    %788 = vsyncpa [#allocation6], 1
    %789 = vsyncpa [#allocation4], 1

</llo_original>
